<compile_context>
chip_gen: v7x
topology: tpu7x:2x2x1
jax: 0.10.0
libtpu: 0.0.40
codegen_flags: <defaults>
</compile_context>

<pallas_src>
import math

import jax
import jax.numpy as jnp
from jax.experimental import pallas as pl
from jax.experimental.pallas import tpu as pltpu


# ---------------------------------------------------------------------------
# Kernel body
# ---------------------------------------------------------------------------
def _diff_concat_kernel(fn_ref, f_ref, o_ref):
    # fn_ref, f_ref: (1, 1, TR, 128);  o_ref: (1, 2, TR, 128)
    f = f_ref[...]
    d = fn_ref[...] - f
    o_ref[:, 0:1, :, :] = f          # first half of channels: raw features
    o_ref[:, 1:2, :, :] = d * d      # second half: squared difference


# ---------------------------------------------------------------------------
# Hardware-aware sizing helpers
# ---------------------------------------------------------------------------
def _vmem_capacity_bytes() -> int:
    """Physical VMEM capacity; conservative (v7x-sized) fallback if unknown."""
    try:
        info = pltpu.get_tpu_info()
        cap = getattr(info, "vmem_capacity_bytes", None)
        if cap:
            return int(cap)
    except Exception:
        pass
    return 64 << 20


def _block_cap_bytes() -> int:
    """Per-input block cap: ~2 MiB on 64 MiB-VMEM parts (v7x), ~4 MiB otherwise."""
    return (2 << 20) if _vmem_capacity_bytes() <= (64 << 20) else (4 << 20)


def _pick_row_tile(rows: int, itemsize: int, cap_bytes: int) -> int:
    """Row tile: full extent if it fits the cap, else a multiple-of-8 tile.

    A ragged last block (rows % tr != 0) is fine: the op is pure elementwise
    and Pallas masks the boundary block.
    """
    cap_rows = max(8, (cap_bytes // (128 * itemsize)) // 8 * 8)
    if rows <= cap_rows:
        return rows
    return cap_rows


# ---------------------------------------------------------------------------
# Layout helpers
# ---------------------------------------------------------------------------
def _to_slab(x: jax.Array):
    """(N, C, H, W) -> lane-dense (N, 1, rows, 128) slab (zero-padded if needed)."""
    N = x.shape[0]
    L = int(math.prod(x.shape[1:]))
    if L % 128 == 0:
        L_pad = L
        slab = x.reshape(N, 1, L // 128, 128)
    else:
        L_pad = ((L + 1023) // 1024) * 1024           # pad to a full 8x128 vreg
        flat = x.reshape(N, L)
        flat = jnp.pad(flat, ((0, 0), (0, L_pad - L)))
        slab = flat.reshape(N, 1, L_pad // 128, 128)
    return slab, L, L_pad


# ---------------------------------------------------------------------------
# Core pallas_call over a (N, 1, rows, 128) slab pair -> (N, 2, rows, 128)
# ---------------------------------------------------------------------------
def _diff_concat_slab(fn_slab: jax.Array, f_slab: jax.Array) -> jax.Array:
    assert fn_slab.shape == f_slab.shape and fn_slab.dtype == f_slab.dtype
    N, _, rows, lanes = fn_slab.shape
    itemsize = jnp.dtype(fn_slab.dtype).itemsize

    tr = _pick_row_tile(rows, itemsize, _block_cap_bytes())
    num_tiles = pl.cdiv(rows, tr)

    # Megacore: guarantee >=2 grid steps when possible so v7x's two TCs (and
    # the pipeline itself) both get work even for small single-batch levels.
    if N * num_tiles < 2 and rows >= 16:
        tr = (((rows + 1) // 2) + 7) // 8 * 8
        num_tiles = pl.cdiv(rows, tr)

    # fn + f + (2x-sized) out blocks, double-buffered, plus headroom; clamp to
    # a safe fraction of the physical VMEM (64 MiB on v7x, 128 MiB v5e/v6e).
    block_bytes = tr * lanes * itemsize
    vmem_bytes = max(32 << 20, 8 * block_bytes + (4 << 20))
    vmem_bytes = min(vmem_bytes, (_vmem_capacity_bytes() * 3) // 4)

    in_spec = pl.BlockSpec((1, 1, tr, lanes), lambda n, t: (n, 0, t, 0))
    out_spec = pl.BlockSpec((1, 2, tr, lanes), lambda n, t: (n, 0, t, 0))

    return pl.pallas_call(
        _diff_concat_kernel,
        out_shape=jax.ShapeDtypeStruct((N, 2, rows, lanes), fn_slab.dtype),
        grid=(N, num_tiles),
        in_specs=[in_spec, in_spec],
        out_specs=out_spec,
        compiler_params=pltpu.CompilerParams(
            dimension_semantics=("parallel", "parallel"),
            vmem_limit_bytes=int(vmem_bytes),
        ),
    )(fn_slab, f_slab)


# ---------------------------------------------------------------------------
# Public API
# ---------------------------------------------------------------------------
def diff_module_level(features_normal: jax.Array, features: jax.Array) -> jax.Array:
    """One level: (N, C, H, W) x 2 -> (N, 2*C, H, W)."""
    assert features_normal.shape == features.shape
    assert features_normal.dtype == features.dtype
    N, C, H, W = features.shape

    fn_slab, L, L_pad = _to_slab(features_normal)
    f_slab, _, _ = _to_slab(features)

    out = _diff_concat_slab(fn_slab, f_slab)          # (N, 2, rows, 128)
    if L_pad != L:
        out = out.reshape(N, 2, L_pad)[:, :, :L]
    return out.reshape(N, 2 * C, H, W)


def _diff_pyramid_fused(features_normal, features):
    """All levels in one pallas_call (slabs concatenated along rows)."""
    N = features[0].shape[0]
    slabs_fn, slabs_f, metas = [], [], []
    off = 0
    for fn, f in zip(features_normal, features):
        s_fn, L, L_pad = _to_slab(fn)
        s_f, _, _ = _to_slab(f)
        rows_l = L_pad // 128
        metas.append((f.shape, L, L_pad, off, rows_l))
        off += rows_l
        slabs_fn.append(s_fn)
        slabs_f.append(s_f)

    fn_all = jnp.concatenate(slabs_fn, axis=2)        # (N, 1, total_rows, 128)
    f_all = jnp.concatenate(slabs_f, axis=2)
    out = _diff_concat_slab(fn_all, f_all)            # (N, 2, total_rows, 128)

    results = []
    for (shape, L, L_pad, off_l, rows_l) in metas:
        _, C, H, W = shape
        piece = out[:, :, off_l:off_l + rows_l, :].reshape(N, 2, L_pad)[:, :, :L]
        results.append(piece.reshape(N, 2 * C, H, W))
    return results


def diff_module(features_normal, features):
    """Full DiffModule.forward over a list of feature levels."""
    levels = list(zip(features_normal, features))
    if not levels:
        return []
    # Fuse tiny pyramids (launch overhead dominates) into one pallas_call;
    # keep per-level calls for large levels where the fusion's wrapper
    # concat/slice copies would roughly double the HBM traffic.
    same_batch = len({f.shape[0] for _, f in levels}) == 1
    same_dtype = len({jnp.dtype(f.dtype) for _, f in levels}) == 1
    total_bytes = sum(f.size * jnp.dtype(f.dtype).itemsize for _, f in levels)
    if len(levels) > 1 and same_batch and same_dtype and total_bytes <= (8 << 20):
        return _diff_pyramid_fused(features_normal, features)
    return [diff_module_level(fn, f) for fn, f in levels]


# ---------------------------------------------------------------------------
# Self-test
# ---------------------------------------------------------------------------
if __name__ == "__main__":
    key = jax.random.PRNGKey(0)

    # Small pyramid of feature maps; the last level has C*H*W % 128 != 0 to
    # exercise the pad-to-(8,128) path.
    level_shapes = [(2, 4, 16, 16), (2, 8, 8, 8), (2, 3, 7, 5)]

    features_normal, features = [], []
    for shape in level_shapes:
        key, k1, k2 = jax.random.split(key, 3)
        features_normal.append(jax.random.normal(k1, shape, dtype=jnp.float32))
        features.append(jax.random.normal(k2, shape, dtype=jnp.float32))

    # Fused-pyramid path (used for small total sizes).
    outs = diff_module(features_normal, features)
    outs = [jax.block_until_ready(o) for o in outs]

    # Per-level path as well (same kernel, different wrapper).
    outs_single = [
        jax.block_until_ready(diff_module_level(fn, f))
        for fn, f in zip(features_normal, features)
    ]

    # Reference check against plain JAX (mirrors the PyTorch forward).
    for fn, f, o, o1 in zip(features_normal, features, outs, outs_single):
        ref = jnp.concatenate([f, (fn - f) ** 2], axis=1)
        assert o.shape == ref.shape, (o.shape, ref.shape)
        assert jnp.allclose(o, ref, atol=1e-6), "fused path mismatch vs reference"
        assert jnp.allclose(o1, ref, atol=1e-6), "per-level path mismatch vs reference"

    print("KERNEL_OK")
</pallas_src>

<mosaic_0001>
module attributes {stable_mosaic.version = 11 : i64} {
  func.func @_diff_concat_kernel(%arg0: i32, %arg1: i32, %arg2: memref<1x1x20x128xf32, #tpu.memory_space<vmem>>, %arg3: memref<1x1x20x128xf32, #tpu.memory_space<vmem>>, %arg4: memref<1x2x20x128xf32, #tpu.memory_space<vmem>>) attributes {dimension_semantics = [#tpu.dimension_semantics<parallel>, #tpu.dimension_semantics<parallel>], iteration_bounds = array<i64: 2, 1>, scalar_prefetch = 0 : i64, scratch_operands = 0 : i64, tpu.core_type = #tpu.core_type<tc>, window_params = [{transform_indices = @transform_0, window_bounds = array<i64: 1, 1, 20, 128>}, {transform_indices = @transform_1, window_bounds = array<i64: 1, 1, 20, 128>}, {transform_indices = @transform_2, window_bounds = array<i64: 1, 2, 20, 128>}]} {
    %c0 = arith.constant 0 : index
    %c0_0 = arith.constant 0 : index
    %c0_1 = arith.constant 0 : index
    %c0_2 = arith.constant 0 : index
    %0 = vector.load %arg3[%c0, %c0_0, %c0_1, %c0_2] : memref<1x1x20x128xf32, #tpu.memory_space<vmem>>, vector<1x1x20x128xf32>
    %c0_3 = arith.constant 0 : index
    %c0_4 = arith.constant 0 : index
    %c0_5 = arith.constant 0 : index
    %c0_6 = arith.constant 0 : index
    %1 = vector.load %arg2[%c0_3, %c0_4, %c0_5, %c0_6] : memref<1x1x20x128xf32, #tpu.memory_space<vmem>>, vector<1x1x20x128xf32>
    %2 = arith.subf %1, %0 : vector<1x1x20x128xf32>
    %c0_7 = arith.constant 0 : index
    %c0_8 = arith.constant 0 : index
    %c0_9 = arith.constant 0 : index
    %c0_10 = arith.constant 0 : index
    %3 = vector.load %arg4[%c0_7, %c0_8, %c0_9, %c0_10] : memref<1x2x20x128xf32, #tpu.memory_space<vmem>>, vector<1x1x20x128xf32>
    tpu.vector_store %arg4[%c0_7, %c0_8, %c0_9, %c0_10], %0 {strides = array<i32>} : memref<1x2x20x128xf32, #tpu.memory_space<vmem>>, vector<1x1x20x128xf32>,
    %4 = arith.mulf %2, %2 : vector<1x1x20x128xf32>
    %c0_11 = arith.constant 0 : index
    %c1 = arith.constant 1 : index
    %c0_12 = arith.constant 0 : index
    %c0_13 = arith.constant 0 : index
    %5 = vector.load %arg4[%c0_11, %c1, %c0_12, %c0_13] : memref<1x2x20x128xf32, #tpu.memory_space<vmem>>, vector<1x1x20x128xf32>
    tpu.vector_store %arg4[%c0_11, %c1, %c0_12, %c0_13], %4 {strides = array<i32>} : memref<1x2x20x128xf32, #tpu.memory_space<vmem>>, vector<1x1x20x128xf32>,
    return
  }
  func.func @transform_0(%arg0: i32, %arg1: i32) -> (i32, i32, i32, i32) {
    %c0_i32 = arith.constant 0 : i32
    %c0_i32_0 = arith.constant 0 : i32
    %c0_i32_1 = arith.constant 0 : i32
    return %arg0, %c0_i32, %arg1, %c0_i32_0 : i32, i32, i32, i32
  }
  func.func @transform_1(%arg0: i32, %arg1: i32) -> (i32, i32, i32, i32) {
    %c0_i32 = arith.constant 0 : i32
    %c0_i32_0 = arith.constant 0 : i32
    %c0_i32_1 = arith.constant 0 : i32
    return %arg0, %c0_i32, %arg1, %c0_i32_0 : i32, i32, i32, i32
  }
  func.func @transform_2(%arg0: i32, %arg1: i32) -> (i32, i32, i32, i32) {
    %c0_i32 = arith.constant 0 : i32
    %c0_i32_0 = arith.constant 0 : i32
    %c0_i32_1 = arith.constant 0 : i32
    return %arg0, %c0_i32, %arg1, %c0_i32_0 : i32, i32, i32, i32
  }
}

</mosaic_0001>

<llo_original>
// kernel: tpu_custom_call.1
$region0: #{tpu_custom_call.1}
  #allocation0 [shape = 'u32[]', space=smem, size = 0x4, offset = 0x4, fixed_abs, tag = 'smem constant byte address 0x4 - core index']
  #allocation1 [shape = 'u32[144,128]{1,0:T(1,128)}', space=vmem, size = 0x12000, scoped, tag = 'internal scratch']
  %s0 = inlined_call_operand.vmem [shape: f32[2,1,20,128], index: 0, kind: input, shape index: {}]
  %s1 = inlined_call_operand.vmem [shape: f32[2,1,20,128], index: 1, kind: input, shape index: {}]
  %s2 = inlined_call_operand.vmem [shape: f32[2,2,20,128], index: 2, kind: output, shape index: {}]
  %s3 = sld [smem:[#allocation0]]
  $region41: #{tpu_custom_call.1} parent=0
    _
  %s5 = ssub.s32 1, %s3
  %s6 = scalar_select 0, %s5, %s3
  loop: start=0, step=1, limit=4
  $region2: #{tpu_custom_call.1} parent=0 // loop_pre_header
    _
  $region3: #{tpu_custom_call.1} parent=0 // loop_header
    %s8 = sphi 0, %s12
    %p9 = scmp.ge.s32.totalorder %s8, 4
    %s15 = sphi 0, %s27
    %s16 = sphi 0, %s23
    %s17 = sphi 0, %s15
    %s18 = sphi 0, %s16
    %s19 = sphi 0, %s17
    %s20 = sphi 0, %s18
    %s32 = sphi 0, %s34
    %s35 = sphi 0, %s32
    %s36 = sphi 0, %s35
    %s52 = sphi 0, %s36
    %s60 = sphi 0, %s62
    %s63 = sphi 0, %s60
    %s64 = sphi 0, %s63
    %s80 = sphi 0, %s64
    %s88 = sphi 0, %s90
    %s91 = sphi 0, %s88
    %s92 = sphi 0, %s91
    %s108 = sphi 0, %s92
  $region4: #{tpu_custom_call.1} parent=0 // loop_header_branch
    %11 = sbr.rel (%p9) target = $region8
  $region5: #{tpu_custom_call.1} parent=0 // loop_body
    %s13 = ssub.s32 %s8, 1
    %s14 = ssub.s32 %s8, 2
    %s21 = sadd.s32 1, %s16
    %p22 = scmp.ge.s32.totalorder %s21, 1
    %s23 = scalar_select %p22, 0, %s21
    %s24 = sadd.s32 1, %s15
    %s25 = scalar_select %p22, %s24, %s15
    %p26 = scmp.ge.s32.totalorder %s25, 2
    %s27 = scalar_select %p26, 0, %s25
    %s28 = ssub.s32 %s15, %s27
    %s29 = ssub.s32 %s16, %s23
    %s30 = sor.u32 %s28, %s29
    %p31 = scmp.eq.s32.totalorder %s30, 0
    %s33 = sadd.s32 %s32, 1
    %s34 = scalar_select %p31, %s32, %s33
    %p37 = pneg %p31
    %p38 = scmp.eq.s32.totalorder %s8, 1
    %p39 = por %p37, %p38
    %p40 = scmp.ne.s32.totalorder %s32, %s35
    %p41 = scmp.eq.s32.totalorder %s8, 0
    %p42 = por %p40, %p41
    %p43 = scmp.ne.s32.totalorder %s32, %s35
    %p44 = scmp.eq.s32.totalorder %s13, 1
    %p45 = por %p43, %p44
    %p46 = scmp.ne.s32.totalorder %s35, %s36
    %p47 = scmp.eq.s32.totalorder %s13, 0
    %p48 = por %p46, %p47
    %p49 = scmp.ne.s32.totalorder %s35, %s36
    %p50 = scmp.eq.s32.totalorder %s14, 1
    %p51 = por %p49, %p50
    %p53 = scmp.ne.s32.totalorder %s36, %s52
    %p54 = scmp.eq.s32.totalorder %s14, 0
    %p55 = por %p53, %p54
    %s56 = ssub.s32 %s15, %s27
    %s57 = ssub.s32 %s16, %s23
    %s58 = sor.u32 %s56, %s57
    %p59 = scmp.eq.s32.totalorder %s58, 0
    %s61 = sadd.s32 %s60, 1
    %s62 = scalar_select %p59, %s60, %s61
    %p65 = pneg %p59
    %p66 = scmp.eq.s32.totalorder %s8, 1
    %p67 = por %p65, %p66
    %p68 = scmp.ne.s32.totalorder %s60, %s63
    %p69 = scmp.eq.s32.totalorder %s8, 0
    %p70 = por %p68, %p69
    %p71 = scmp.ne.s32.totalorder %s60, %s63
    %p72 = scmp.eq.s32.totalorder %s13, 1
    %p73 = por %p71, %p72
    %p74 = scmp.ne.s32.totalorder %s63, %s64
    %p75 = scmp.eq.s32.totalorder %s13, 0
    %p76 = por %p74, %p75
    %p77 = scmp.ne.s32.totalorder %s63, %s64
    %p78 = scmp.eq.s32.totalorder %s14, 1
    %p79 = por %p77, %p78
    %p81 = scmp.ne.s32.totalorder %s64, %s80
    %p82 = scmp.eq.s32.totalorder %s14, 0
    %p83 = por %p81, %p82
    %s84 = ssub.s32 %s15, %s27
    %s85 = ssub.s32 %s16, %s23
    %s86 = sor.u32 %s84, %s85
    %p87 = scmp.eq.s32.totalorder %s86, 0
    %s89 = sadd.s32 %s88, 1
    %s90 = scalar_select %p87, %s88, %s89
    %p93 = pneg %p87
    %p94 = scmp.eq.s32.totalorder %s8, 1
    %p95 = por %p93, %p94
    %p96 = scmp.ne.s32.totalorder %s88, %s91
    %p97 = scmp.eq.s32.totalorder %s8, 0
    %p98 = por %p96, %p97
    %p99 = scmp.ne.s32.totalorder %s88, %s91
    %p100 = scmp.eq.s32.totalorder %s13, 1
    %p101 = por %p99, %p100
    %p102 = scmp.ne.s32.totalorder %s91, %s92
    %p103 = scmp.eq.s32.totalorder %s13, 0
    %p104 = por %p102, %p103
    %p105 = scmp.ne.s32.totalorder %s91, %s92
    %p106 = scmp.eq.s32.totalorder %s14, 1
    %p107 = por %p105, %p106
    %p109 = scmp.ne.s32.totalorder %s92, %s108
    %p110 = scmp.eq.s32.totalorder %s14, 0
    %p111 = por %p109, %p110
    %p112 = scmp.le.s32.totalorder 1, %s8
    %p113 = scmp.lt.s32.totalorder %s8, 3
    %p114 = pnand %p112, %p113
    %p115 = pneg %p114
    // Predicated region
    $region9: #{tpu_custom_call.1} parent=5 // pred_check
      _
    $region10: #{tpu_custom_call.1} parent=5 // pred_check_branch
      %117 = sbr.rel (%p114) target = $region12
    $region11: #{tpu_custom_call.1} parent=5 // pred_region
      %s118 = ssub.s32 %s8, 1
    $region12: #{tpu_custom_call.1} parent=5 // pred_fallthru
      _
    %p119 = scmp.lt.s32.totalorder %s8, 2
    // Predicated region
    $region13: #{tpu_custom_call.1} parent=5 // pred_check
      %p120 = pneg %p119
    $region14: #{tpu_custom_call.1} parent=5 // pred_check_branch
      %122 = sbr.rel (%p120) target = $region16
    $region15: #{tpu_custom_call.1} parent=5 // pred_region
      // Predicated region
      $region17: #{tpu_custom_call.1} parent=15 // pred_check
        %p123 = pneg %p42
      $region18: #{tpu_custom_call.1} parent=15 // pred_check_branch
        %125 = sbr.rel (%p123) target = $region20
      $region19: #{tpu_custom_call.1} parent=15 // pred_region
        %s126 = smul.u32 3, %s16
        %p127 = scmp.lt.s32.totalorder %s15, 1
        %s128 = scalar_select %p127, %s15, 1
        %p129 = scmp.lt.s32.totalorder %s126, 2
        %s130 = scalar_select %p129, %s126, 2
        %s131 = smul.addr %s128, 3
        %s132 = sadd.s32 %s130, %s131
        %s133 = smul.addr %s132, 8
        %s134 = scalar_lea.vmem %s0, %s133
        %s135 = smul.u32 3, %s16
      $region20: #{tpu_custom_call.1} parent=15 // pred_fallthru
        _
      // Predicated region
      $region21: #{tpu_custom_call.1} parent=15 // pred_check
        %p136 = pneg %p70
      $region22: #{tpu_custom_call.1} parent=15 // pred_check_branch
        %138 = sbr.rel (%p136) target = $region24
      $region23: #{tpu_custom_call.1} parent=15 // pred_region
        %s139 = smul.u32 3, %s16
        %p140 = scmp.lt.s32.totalorder %s15, 1
        %s141 = scalar_select %p140, %s15, 1
        %p142 = scmp.lt.s32.totalorder %s139, 2
        %s143 = scalar_select %p142, %s139, 2
        %s144 = smul.addr %s141, 3
        %s145 = sadd.s32 %s143, %s144
        %s146 = smul.addr %s145, 8
        %s147 = scalar_lea.vmem %s1, %s146
        %s148 = smul.u32 3, %s16
      $region24: #{tpu_custom_call.1} parent=15 // pred_fallthru
        _
    $region16: #{tpu_custom_call.1} parent=5 // pred_fallthru
      _
    %p149 = scmp.le.s32.totalorder 1, %s8
    %p150 = scmp.lt.s32.totalorder %s8, 3
    %p151 = pnand %p149, %p150
    %p152 = pneg %p151
    // Predicated region
    $region25: #{tpu_custom_call.1} parent=5 // pred_check
      _
    $region26: #{tpu_custom_call.1} parent=5 // pred_check_branch
      %154 = sbr.rel (%p151) target = $region28
    $region27: #{tpu_custom_call.1} parent=5 // pred_region
      %s155 = ssub.s32 %s8, 1
      %s156 = smul.u32 3, %s18
      %p157 = scmp.lt.s32.totalorder %s17, 1
      %s158 = scalar_select %p157, %s17, 1
      %p159 = scmp.lt.s32.totalorder %s156, 2
      %s160 = scalar_select %p159, %s156, 2
      %s161 = smul.addr %s158, 3
      %s162 = sadd.s32 %s160, %s161
      %s163 = smul.addr %s162, 8
      %s164 = scalar_lea.vmem %s0, %s163
      %p165 = pneg %p48
      %p166 = pneg %p45
      %s167 = smul.u32 3, %s18
      %p168 = scmp.lt.s32.totalorder %s17, 1
      %s169 = scalar_select %p168, %s17, 1
      %p170 = scmp.lt.s32.totalorder %s167, 2
      %s171 = scalar_select %p170, %s167, 2
      %s172 = smul.addr %s169, 3
      %s173 = sadd.s32 %s171, %s172
      %s174 = smul.addr %s173, 8
      %s175 = scalar_lea.vmem %s1, %s174
      %p176 = pneg %p76
      %p177 = pneg %p73
      %p178 = pneg %p104
      %p179 = pneg %p101
      %s180 = smul.u32 3, %s18
      %p181 = scmp.lt.s32.totalorder %s17, 1
      %s182 = scalar_select %p181, %s17, 1
      %p183 = scmp.lt.s32.totalorder %s180, 2
      %s184 = scalar_select %p183, %s180, 2
      %s185 = smul.addr %s182, 6
      %s186 = sadd.s32 %s184, %s185
      %s187 = smul.addr %s186, 8
      %s188 = scalar_lea.vmem %s2, %s187
      %s189 = smul.u32 3, %s18
      %p190 = scmp.lt.s32.totalorder %s17, 1
      %s191 = scalar_select %p190, %s17, 1
      %p192 = scmp.lt.s32.totalorder %s189, 2
      %s193 = scalar_select %p192, %s189, 2
      %s194 = smul.addr %s191, 3
      %s195 = sadd.s32 %s193, %s194
      %s196 = smul.addr %s195, 8
      %s197 = scalar_lea.vmem %s0, %s196
      %s198 = smul.u32 3, %s18
      %s199 = smul.u32 3, %s18
      %p200 = scmp.lt.s32.totalorder %s17, 1
      %s201 = scalar_select %p200, %s17, 1
      %p202 = scmp.lt.s32.totalorder %s199, 2
      %s203 = scalar_select %p202, %s199, 2
      %s204 = smul.addr %s201, 3
      %s205 = sadd.s32 %s203, %s204
      %s206 = smul.addr %s205, 8
      %s207 = scalar_lea.vmem %s1, %s206
      %s208 = smul.u32 3, %s18
      %s209 = smul.u32 3, %s18
      %p210 = scmp.lt.s32.totalorder %s17, 1
      %s211 = scalar_select %p210, %s17, 1
      %p212 = scmp.lt.s32.totalorder %s209, 2
      %s213 = scalar_select %p212, %s209, 2
      %s214 = smul.addr %s211, 6
      %s215 = sadd.s32 %s213, %s214
      %s216 = smul.addr %s215, 8
      %s217 = scalar_lea.vmem %s2, %s216
      %s218 = smul.u32 3, %s18
      %v219 = vld [vmem:[%s207] sm:$0xff]
      %v220 = vld [vmem:[%s207 + $0x8] sm:$0xff]
      %v221 = vld [vmem:[%s207 + $0x10] sm:$0xf]
      %v222 = vld [vmem:[%s197] sm:$0xff]
      %v223 = vld [vmem:[%s197 + $0x8] sm:$0xff]
      %v224 = vld [vmem:[%s197 + $0x10] sm:$0xf]
      %v225 = vsub.f32 %v222, %v219
      %v226 = vsub.f32 %v223, %v220
      %v227 = vsub.f32 %v224, %v221
      %228 = vst [vmem:[%s217] sm:$0xff] %v219
      %229 = vst [vmem:[%s217 + $0x8] sm:$0xff] %v220
      %230 = vst [vmem:[%s217 + $0x10] sm:$0xf] %v221
      %v231 = vmul.f32 %v225, %v225
      %v232 = vmul.f32 %v226, %v226
      %v233 = vmul.f32 %v227, %v227
      %s234 = scalar_lea.vmem %s217, 24
      %235 = vst [vmem:[%s234] sm:$0xff] %v231
      %236 = vst [vmem:[%s234 + $0x8] sm:$0xff] %v232
      %237 = vst [vmem:[%s234 + $0x10] sm:$0xf] %v233
      %s238 = smul.u32 3, %s18
      %p239 = scmp.lt.s32.totalorder %s17, 1
      %s240 = scalar_select %p239, %s17, 1
      %p241 = scmp.lt.s32.totalorder %s238, 2
      %s242 = scalar_select %p241, %s238, 2
      %s243 = smul.addr %s240, 6
      %s244 = sadd.s32 %s242, %s243
      %s245 = smul.addr %s244, 8
      %s246 = scalar_lea.vmem %s2, %s245
      // Predicated region
      $region29: #{tpu_custom_call.1} parent=27 // pred_check
        %p247 = pneg %p101
      $region30: #{tpu_custom_call.1} parent=27 // pred_check_branch
        %249 = sbr.rel (%p247) target = $region32
      $region31: #{tpu_custom_call.1} parent=27 // pred_region
        %s250 = smul.u32 3, %s18
      $region32: #{tpu_custom_call.1} parent=27 // pred_fallthru
        _
    $region28: #{tpu_custom_call.1} parent=5 // pred_fallthru
      _
    %p251 = scmp.le.s32.totalorder 2, %s8
    // Predicated region
    $region33: #{tpu_custom_call.1} parent=5 // pred_check
      %p252 = pneg %p251
    $region34: #{tpu_custom_call.1} parent=5 // pred_check_branch
      %254 = sbr.rel (%p252) target = $region36
    $region35: #{tpu_custom_call.1} parent=5 // pred_region
      %s255 = ssub.s32 %s8, 2
      // Predicated region
      $region37: #{tpu_custom_call.1} parent=35 // pred_check
        %p256 = pneg %p107
      $region38: #{tpu_custom_call.1} parent=35 // pred_check_branch
        %258 = sbr.rel (%p256) target = $region40
      $region39: #{tpu_custom_call.1} parent=35 // pred_region
        %s259 = smul.u32 3, %s20
        %p260 = scmp.lt.s32.totalorder %s19, 1
        %s261 = scalar_select %p260, %s19, 1
        %p262 = scmp.lt.s32.totalorder %s259, 2
        %s263 = scalar_select %p262, %s259, 2
        %s264 = smul.addr %s261, 6
        %s265 = sadd.s32 %s263, %s264
        %s266 = smul.addr %s265, 8
        %s267 = scalar_lea.vmem %s2, %s266
      $region40: #{tpu_custom_call.1} parent=35 // pred_fallthru
        _
    $region36: #{tpu_custom_call.1} parent=5 // pred_fallthru
      _
  $region6: #{tpu_custom_call.1} parent=0 // loop_footer
    %s12 = sadd.s32 1, %s8
  $region7: #{tpu_custom_call.1} parent=0 // loop_footer_branch
    %7 = sbr.rel target = $region3
  $region8: #{tpu_custom_call.1} parent=0 // loop_exit
    _

</llo_original>
